<compile_context>
chip_gen: v7x
topology: tpu7x:2x2x1
jax: 0.10.0
libtpu: 0.0.40
codegen_flags: <defaults>
</compile_context>

<pallas_src>
import functools

import jax
import jax.numpy as jnp
import numpy as np
from jax import lax
from jax.experimental import pallas as pl
from jax.experimental.pallas import tpu as pltpu

EPS = 1e-5


def _stats_kernel(x_ref, gamma_ref, beta_ref, scale_ref, shift_ref,
                  sum_sc, sumsq_sc, *, inv_count):
    """Pass 1: per-channel sum / sum-of-squares -> fused (scale, shift)."""
    i = pl.program_id(0)

    @pl.when(i == 0)
    def _():
        sum_sc[...] = jnp.zeros_like(sum_sc)
        sumsq_sc[...] = jnp.zeros_like(sumsq_sc)

    x = x_ref[...].astype(jnp.float32)            # [tm, C, L]
    # Reduce over the leading (row) axis with VPU adds; keep lane-partials in
    # the [C, L] accumulators.  x is read exactly once for the statistics.
    sum_sc[...] += jnp.sum(x, axis=0)
    sumsq_sc[...] += jnp.sum(x * x, axis=0)

    @pl.when(i == pl.num_programs(0) - 1)
    def _():
        s = jnp.sum(sum_sc[...], axis=1, keepdims=True)       # [C, 1]
        ss = jnp.sum(sumsq_sc[...], axis=1, keepdims=True)    # [C, 1]
        mean = s * inv_count
        var = jnp.maximum(ss * inv_count - mean * mean, 0.0)  # biased variance
        inv_std = lax.rsqrt(var + EPS)
        scale = gamma_ref[...] * inv_std
        scale_ref[...] = scale
        shift_ref[...] = beta_ref[...] - mean * scale


def _apply_kernel(x_ref, scale_ref, shift_ref, o_ref):
    """Pass 2: y = x * scale[c] + shift[c]  (affine folded into normalize)."""
    x = x_ref[...].astype(jnp.float32)            # [tm, C, L]
    y = x * scale_ref[...][None] + shift_ref[...][None]
    o_ref[...] = y.astype(o_ref.dtype)


def _pick_block_m(M, C, L, itemsize, target_bytes=1 << 20, cap=512):
    """Largest divisor of M (<= cap) whose [tm, C, L] tile fits target_bytes."""
    best = 1
    for d in range(1, min(M, cap) + 1):
        if M % d == 0 and d * C * L * itemsize <= target_bytes:
            best = d
    return best


def batchnorm3d_ext(x, gamma, beta):
    """x: [B, T, C, H, W] (channel = axis 2). Returns same shape/dtype."""
    B, T, C, H, W = x.shape
    M = B * T
    L = H * W
    N = M * L                                     # true per-channel count
    itemsize = jnp.dtype(x.dtype).itemsize

    # Transpose-free: contiguous reshape only (no HBM data movement).
    x3 = x.reshape(M, C, L)
    gamma2 = gamma.reshape(C, 1).astype(jnp.float32)
    beta2 = beta.reshape(C, 1).astype(jnp.float32)

    tm = _pick_block_m(M, C, L, itemsize)
    grid = (M // tm,)
    tile_bytes = tm * C * L * itemsize
    # double-buffered in/out tiles + f32 accumulators + generous headroom
    vmem_limit = int(min(96 << 20, max(8 << 20, 6 * tile_bytes + 2 * C * L * 4)))

    x_spec = pl.BlockSpec((tm, C, L), lambda i: (i, 0, 0))
    cvec_spec = pl.BlockSpec((C, 1), lambda i: (0, 0))

    # ---- Pass 1: per-channel statistics -> fused (scale, shift) -------------
    scale, shift = pl.pallas_call(
        functools.partial(_stats_kernel, inv_count=1.0 / N),
        out_shape=(jax.ShapeDtypeStruct((C, 1), jnp.float32),
                   jax.ShapeDtypeStruct((C, 1), jnp.float32)),
        grid_spec=pltpu.PrefetchScalarGridSpec(
            num_scalar_prefetch=0,
            grid=grid,
            in_specs=[x_spec, cvec_spec, cvec_spec],
            out_specs=(cvec_spec, cvec_spec),
            scratch_shapes=[pltpu.VMEM((C, L), jnp.float32),
                            pltpu.VMEM((C, L), jnp.float32)],
        ),
        compiler_params=pltpu.CompilerParams(
            dimension_semantics=("arbitrary",),
            vmem_limit_bytes=vmem_limit,
        ),
        cost_estimate=pl.CostEstimate(
            flops=3 * C * N, transcendentals=C,
            bytes_accessed=C * N * itemsize + 4 * C * 4),
    )(x3, gamma2, beta2)

    # ---- Pass 2: y = x * scale + shift ---------------------------------------
    out3 = pl.pallas_call(
        _apply_kernel,
        out_shape=jax.ShapeDtypeStruct((M, C, L), x.dtype),
        grid_spec=pltpu.PrefetchScalarGridSpec(
            num_scalar_prefetch=0,
            grid=grid,
            in_specs=[x_spec, cvec_spec, cvec_spec],
            out_specs=x_spec,
        ),
        compiler_params=pltpu.CompilerParams(
            dimension_semantics=("parallel",),   # shards across TCs on v7x
            vmem_limit_bytes=vmem_limit,
        ),
        cost_estimate=pl.CostEstimate(
            flops=2 * C * N, transcendentals=0,
            bytes_accessed=2 * C * N * itemsize + 2 * C * 4),
    )(x3, scale, shift)

    return out3.reshape(B, T, C, H, W)


def _reference(x, gamma, beta):
    # pure-JAX reference of training-mode BatchNorm3d over channel axis 2
    xf = x.astype(jnp.float32)
    axes = (0, 1, 3, 4)
    mean = jnp.mean(xf, axis=axes, keepdims=True)
    var = jnp.mean((xf - mean) ** 2, axis=axes, keepdims=True)
    g = gamma.reshape(1, 1, -1, 1, 1)
    b = beta.reshape(1, 1, -1, 1, 1)
    return ((xf - mean) * lax.rsqrt(var + EPS) * g + b).astype(x.dtype)


if __name__ == "__main__":
    # small shapes consistent with the module: [B, T, C, H, W]
    B, T, C, H, W = 2, 8, 4, 16, 16

    key = jax.random.PRNGKey(0)
    x = jax.random.normal(key, (B, T, C, H, W), dtype=jnp.float32)

    # nn.BatchNorm3d(C) defaults are ones/zeros; use non-trivial deterministic
    # values so the affine path is exercised.
    gamma = 1.0 + 0.1 * jnp.arange(C, dtype=jnp.float32)
    beta = 0.05 * jnp.arange(C, dtype=jnp.float32)

    out = batchnorm3d_ext(x, gamma, beta)
    out = jax.block_until_ready(out)

    ref = jax.block_until_ready(_reference(x, gamma, beta))
    assert out.shape == x.shape and out.dtype == x.dtype
    np.testing.assert_allclose(np.asarray(out), np.asarray(ref), atol=1e-4, rtol=1e-4)

    print("KERNEL_OK")
</pallas_src>

<mosaic_0001>
module attributes {stable_mosaic.version = 11 : i64} {
  func.func @_stats_kernel(%arg0: i32, %arg1: memref<16x4x256xf32, #tpu.memory_space<vmem>>, %arg2: memref<4x1xf32, #tpu.memory_space<vmem>>, %arg3: memref<4x1xf32, #tpu.memory_space<vmem>>, %arg4: memref<4x1xf32, #tpu.memory_space<vmem>>, %arg5: memref<4x1xf32, #tpu.memory_space<vmem>>, %arg6: memref<4x256xf32, #tpu.memory_space<vmem>>, %arg7: memref<4x256xf32, #tpu.memory_space<vmem>>) attributes {dimension_semantics = [#tpu.dimension_semantics<arbitrary>], iteration_bounds = array<i64: 1>, scalar_prefetch = 0 : i64, scratch_operands = 2 : i64, tpu.core_type = #tpu.core_type<tc>, window_params = [{transform_indices = @transform_0, window_bounds = array<i64: 16, 4, 256>}, {pipeline_mode = #tpu.pipeline_mode<synchronous>, transform_indices = @transform_1, window_bounds = array<i64: 4, 1>}, {pipeline_mode = #tpu.pipeline_mode<synchronous>, transform_indices = @transform_2, window_bounds = array<i64: 4, 1>}, {pipeline_mode = #tpu.pipeline_mode<synchronous>, transform_indices = @transform_3, window_bounds = array<i64: 4, 1>}, {pipeline_mode = #tpu.pipeline_mode<synchronous>, transform_indices = @transform_4, window_bounds = array<i64: 4, 1>}]} {
    %c0_i32 = arith.constant 0 : i32
    %0 = arith.cmpi eq, %arg0, %c0_i32 : i32
    %1 = arith.extui %0 : i1 to i32
    %c0_i32_0 = arith.constant 0 : i32
    %2 = arith.cmpi ne, %1, %c0_i32_0 : i32
    scf.if %2 {
      %cst_14 = arith.constant 0.000000e+00 : f32
      %16 = vector.broadcast %cst_14 : f32 to vector<4x256xf32>
      %c0_15 = arith.constant 0 : index
      %c0_16 = arith.constant 0 : index
      %17 = vector.load %arg6[%c0_15, %c0_16] : memref<4x256xf32, #tpu.memory_space<vmem>>, vector<4x256xf32>
      tpu.vector_store %arg6[%c0_15, %c0_16], %16 {strides = array<i32>} : memref<4x256xf32, #tpu.memory_space<vmem>>, vector<4x256xf32>,
      %cst_17 = arith.constant 0.000000e+00 : f32
      %18 = vector.broadcast %cst_17 : f32 to vector<4x256xf32>
      %c0_18 = arith.constant 0 : index
      %c0_19 = arith.constant 0 : index
      %19 = vector.load %arg7[%c0_18, %c0_19] : memref<4x256xf32, #tpu.memory_space<vmem>>, vector<4x256xf32>
      tpu.vector_store %arg7[%c0_18, %c0_19], %18 {strides = array<i32>} : memref<4x256xf32, #tpu.memory_space<vmem>>, vector<4x256xf32>,
    } else {
    }
    %c0 = arith.constant 0 : index
    %c0_1 = arith.constant 0 : index
    %c0_2 = arith.constant 0 : index
    %3 = vector.load %arg1[%c0, %c0_1, %c0_2] : memref<16x4x256xf32, #tpu.memory_space<vmem>>, vector<16x4x256xf32>
    %c0_3 = arith.constant 0 : index
    %c0_4 = arith.constant 0 : index
    %4 = vector.load %arg6[%c0_3, %c0_4] : memref<4x256xf32, #tpu.memory_space<vmem>>, vector<4x256xf32>
    %cst = arith.constant dense<0.000000e+00> : vector<4x256xf32>
    %5 = vector.multi_reduction <add>, %3, %cst [0] : vector<16x4x256xf32> to vector<4x256xf32>
    %6 = arith.addf %4, %5 : vector<4x256xf32>
    %c0_5 = arith.constant 0 : index
    %c0_6 = arith.constant 0 : index
    %7 = vector.load %arg6[%c0_5, %c0_6] : memref<4x256xf32, #tpu.memory_space<vmem>>, vector<4x256xf32>
    tpu.vector_store %arg6[%c0_5, %c0_6], %6 {strides = array<i32>} : memref<4x256xf32, #tpu.memory_space<vmem>>, vector<4x256xf32>,
    %c0_7 = arith.constant 0 : index
    %c0_8 = arith.constant 0 : index
    %8 = vector.load %arg7[%c0_7, %c0_8] : memref<4x256xf32, #tpu.memory_space<vmem>>, vector<4x256xf32>
    %9 = arith.mulf %3, %3 : vector<16x4x256xf32>
    %cst_9 = arith.constant dense<0.000000e+00> : vector<4x256xf32>
    %10 = vector.multi_reduction <add>, %9, %cst_9 [0] : vector<16x4x256xf32> to vector<4x256xf32>
    %11 = arith.addf %8, %10 : vector<4x256xf32>
    %c0_10 = arith.constant 0 : index
    %c0_11 = arith.constant 0 : index
    %12 = vector.load %arg7[%c0_10, %c0_11] : memref<4x256xf32, #tpu.memory_space<vmem>>, vector<4x256xf32>
    tpu.vector_store %arg7[%c0_10, %c0_11], %11 {strides = array<i32>} : memref<4x256xf32, #tpu.memory_space<vmem>>, vector<4x256xf32>,
    %c0_i32_12 = arith.constant 0 : i32
    %13 = arith.cmpi eq, %arg0, %c0_i32_12 : i32
    %14 = arith.extui %13 : i1 to i32
    %c0_i32_13 = arith.constant 0 : i32
    %15 = arith.cmpi ne, %14, %c0_i32_13 : i32
    scf.if %15 {
      %c0_14 = arith.constant 0 : index
      %c0_15 = arith.constant 0 : index
      %16 = vector.load %arg6[%c0_14, %c0_15] : memref<4x256xf32, #tpu.memory_space<vmem>>, vector<4x256xf32>
      %cst_16 = arith.constant dense<0.000000e+00> : vector<4xf32>
      %17 = vector.multi_reduction <add>, %16, %cst_16 [1] : vector<4x256xf32> to vector<4xf32>
      %18 = vector.shape_cast %17 : vector<4xf32> to vector<4x1xf32>
      %c0_17 = arith.constant 0 : index
      %c0_18 = arith.constant 0 : index
      %19 = vector.load %arg7[%c0_17, %c0_18] : memref<4x256xf32, #tpu.memory_space<vmem>>, vector<4x256xf32>
      %cst_19 = arith.constant dense<0.000000e+00> : vector<4xf32>
      %20 = vector.multi_reduction <add>, %19, %cst_19 [1] : vector<4x256xf32> to vector<4xf32>
      %21 = vector.shape_cast %20 : vector<4xf32> to vector<4x1xf32>
      %cst_20 = arith.constant 2.44140625E-4 : f32
      %22 = vector.broadcast %cst_20 : f32 to vector<4x1xf32>
      %23 = arith.mulf %18, %22 : vector<4x1xf32>
      %cst_21 = arith.constant 2.44140625E-4 : f32
      %24 = vector.broadcast %cst_21 : f32 to vector<4x1xf32>
      %25 = arith.mulf %21, %24 : vector<4x1xf32>
      %26 = arith.mulf %23, %23 : vector<4x1xf32>
      %27 = arith.subf %25, %26 : vector<4x1xf32>
      %cst_22 = arith.constant 0.000000e+00 : f32
      %28 = vector.broadcast %cst_22 : f32 to vector<4x1xf32>
      %29 = arith.maximumf %27, %28 : vector<4x1xf32>
      %cst_23 = arith.constant 9.99999974E-6 : f32
      %30 = vector.broadcast %cst_23 : f32 to vector<4x1xf32>
      %31 = arith.addf %29, %30 : vector<4x1xf32>
      %32 = math.rsqrt %31 : vector<4x1xf32>
      %c0_24 = arith.constant 0 : index
      %c0_25 = arith.constant 0 : index
      %33 = vector.load %arg2[%c0_24, %c0_25] : memref<4x1xf32, #tpu.memory_space<vmem>>, vector<4x1xf32>
      %34 = arith.mulf %33, %32 : vector<4x1xf32>
      %c0_26 = arith.constant 0 : index
      %c0_27 = arith.constant 0 : index
      %35 = vector.load %arg4[%c0_26, %c0_27] : memref<4x1xf32, #tpu.memory_space<vmem>>, vector<4x1xf32>
      tpu.vector_store %arg4[%c0_26, %c0_27], %34 {strides = array<i32>} : memref<4x1xf32, #tpu.memory_space<vmem>>, vector<4x1xf32>,
      %c0_28 = arith.constant 0 : index
      %c0_29 = arith.constant 0 : index
      %36 = vector.load %arg3[%c0_28, %c0_29] : memref<4x1xf32, #tpu.memory_space<vmem>>, vector<4x1xf32>
      %37 = arith.mulf %23, %34 : vector<4x1xf32>
      %38 = arith.subf %36, %37 : vector<4x1xf32>
      %c0_30 = arith.constant 0 : index
      %c0_31 = arith.constant 0 : index
      %39 = vector.load %arg5[%c0_30, %c0_31] : memref<4x1xf32, #tpu.memory_space<vmem>>, vector<4x1xf32>
      tpu.vector_store %arg5[%c0_30, %c0_31], %38 {strides = array<i32>} : memref<4x1xf32, #tpu.memory_space<vmem>>, vector<4x1xf32>,
    } else {
    }
    return
  }
  func.func @transform_0(%arg0: i32) -> (i32, i32, i32) {
    %c0_i32 = arith.constant 0 : i32
    %c0_i32_0 = arith.constant 0 : i32
    %c0_i32_1 = arith.constant 0 : i32
    return %arg0, %c0_i32, %c0_i32_0 : i32, i32, i32
  }
  func.func @transform_1(%arg0: i32) -> (i32, i32) {
    %c0_i32 = arith.constant 0 : i32
    %c0_i32_0 = arith.constant 0 : i32
    %c0_i32_1 = arith.constant 0 : i32
    return %c0_i32, %c0_i32_0 : i32, i32
  }
  func.func @transform_2(%arg0: i32) -> (i32, i32) {
    %c0_i32 = arith.constant 0 : i32
    %c0_i32_0 = arith.constant 0 : i32
    %c0_i32_1 = arith.constant 0 : i32
    return %c0_i32, %c0_i32_0 : i32, i32
  }
  func.func @transform_3(%arg0: i32) -> (i32, i32) {
    %c0_i32 = arith.constant 0 : i32
    %c0_i32_0 = arith.constant 0 : i32
    %c0_i32_1 = arith.constant 0 : i32
    return %c0_i32, %c0_i32_0 : i32, i32
  }
  func.func @transform_4(%arg0: i32) -> (i32, i32) {
    %c0_i32 = arith.constant 0 : i32
    %c0_i32_0 = arith.constant 0 : i32
    %c0_i32_1 = arith.constant 0 : i32
    return %c0_i32, %c0_i32_0 : i32, i32
  }
}

</mosaic_0001>

<llo_original>
// kernel: tpu_custom_call.1
$region0: #{tpu_custom_call.1}
  #allocation0 [shape = 'u32[]', space=smem, size = 0x4, offset = 0x4, fixed_abs, tag = 'smem constant byte address 0x4 - core index']
  #allocation1 [shape = 'u32[144,128]{1,0:T(1,128)}', space=vmem, size = 0x12000, scoped, tag = 'internal scratch']
  #allocation2 [shape = 'f32[4,256]{1,0:T(4,128)}', space=vmem, size = 0x1000, scoped, tag = 'scratch operand']
  #allocation3 [shape = 'f32[4,256]{1,0:T(4,128)}', space=vmem, size = 0x1000, scoped, tag = 'scratch operand']
  %s0 = inlined_call_operand.hbm [shape: f32[16,4,256], index: 0, kind: input, shape index: {}]
  %s1 = inlined_call_operand.vmem [shape: f32[4,1], index: 1, kind: input, shape index: {}]
  %s2 = inlined_call_operand.vmem [shape: f32[4,1], index: 2, kind: input, shape index: {}]
  %s3 = inlined_call_operand.vmem [shape: f32[4,1], index: 3, kind: output, shape index: {0}]
  %s4 = inlined_call_operand.vmem [shape: f32[4,1], index: 4, kind: output, shape index: {1}]
  %5 = xla_tuple %s3, %s4
  %s6 = sld [smem:[#allocation0]]
  $region42: #{tpu_custom_call.1} parent=0
    _
  %s8 = ssub.s32 1, %s6
  %s9 = scalar_select 0, %s8, %s6
  $region1: #{tpu_custom_call.1} parent=0
    #allocation4 [shape = 'u8[65536]{0}', space=vmem, size = 0x10000, scoped, tag = 'input window, operand 0, single buffered']
    #allocation5 [shape = 's32[1]{0}', space=sflag, size = 0x4, scoped, tag = 'scoped memory for tpu_custom_call.1']
    %10 = vsyncpa [#allocation5], 0
    // Predicated region
    $region2: #{tpu_custom_call.1} parent=1 // pred_check
      _
    $region3: #{tpu_custom_call.1} parent=1 // pred_check_branch
      %12 = sbr.rel (0) target = $region5
    $region4: #{tpu_custom_call.1} parent=1 // pred_region
      %s14 = ssub.s32 2048, 2048
      %15 = vsyncadd [#allocation5], %s14
      %s16 = sshll.u32 [#allocation4], 4
      %s17 = int_to_ptr.vmem [resolvable:$true] %s16
      %22 = dma.hbm_to_vmem [thread:$0]  %s0, 2048, %s17, [#allocation5], 128, 128, 8
    $region5: #{tpu_custom_call.1} parent=1 // pred_fallthru
      _
    // Predicated region
    $region6: #{tpu_custom_call.1} parent=1 // pred_check
      _
    $region7: #{tpu_custom_call.1} parent=1 // pred_check_branch
      %24 = sbr.rel (0) target = $region9
    $region8: #{tpu_custom_call.1} parent=1 // pred_region
      _
    $region9: #{tpu_custom_call.1} parent=1 // pred_fallthru
      _
    // Predicated region
    $region10: #{tpu_custom_call.1} parent=1 // pred_check
      _
    $region11: #{tpu_custom_call.1} parent=1 // pred_check_branch
      %26 = sbr.rel (0) target = $region13
    $region12: #{tpu_custom_call.1} parent=1 // pred_region
      _
    $region13: #{tpu_custom_call.1} parent=1 // pred_fallthru
      _
    // Predicated region
    $region14: #{tpu_custom_call.1} parent=1 // pred_check
      _
    $region15: #{tpu_custom_call.1} parent=1 // pred_check_branch
      %28 = sbr.rel (0) target = $region17
    $region16: #{tpu_custom_call.1} parent=1 // pred_region
      %29 = dma.done [#allocation5], 2048
    $region17: #{tpu_custom_call.1} parent=1 // pred_fallthru
      _
    %p30 = scmp.eq.s32.totalorder 0, 0
    // Predicated region
    $region18: #{tpu_custom_call.1} parent=1 // pred_check
      %p31 = pneg %p30
    $region19: #{tpu_custom_call.1} parent=1 // pred_check_branch
      %33 = sbr.rel (%p31) target = $region21
    $region20: #{tpu_custom_call.1} parent=1 // pred_region
      %34 = vst [vmem:[#allocation2] sm:$0xff] 0.0
      %35 = vst [vmem:[#allocation3] sm:$0xff] 0.0
    $region21: #{tpu_custom_call.1} parent=1 // pred_fallthru
      _
    %v36 = vld [vmem:[#allocation4] sm:$0xff]
    %v37 = vld [vmem:[#allocation4 + $0x8] sm:$0xff]
    %v38 = vld [vmem:[#allocation4 + $0x10] sm:$0xff]
    %v39 = vld [vmem:[#allocation4 + $0x18] sm:$0xff]
    %v40 = vld [vmem:[#allocation4 + $0x20] sm:$0xff]
    %v41 = vld [vmem:[#allocation4 + $0x28] sm:$0xff]
    %v42 = vld [vmem:[#allocation4 + $0x30] sm:$0xff]
    %v43 = vld [vmem:[#allocation4 + $0x38] sm:$0xff]
    %v44 = vld [vmem:[#allocation4 + $0x40] sm:$0xff]
    %v45 = vld [vmem:[#allocation4 + $0x48] sm:$0xff]
    %v46 = vld [vmem:[#allocation4 + $0x50] sm:$0xff]
    %v47 = vld [vmem:[#allocation4 + $0x58] sm:$0xff]
    %v48 = vld [vmem:[#allocation4 + $0x60] sm:$0xff]
    %v49 = vld [vmem:[#allocation4 + $0x68] sm:$0xff]
    %v50 = vld [vmem:[#allocation4 + $0x70] sm:$0xff]
    %v51 = vld [vmem:[#allocation4 + $0x78] sm:$0xff]
    %v52 = vld [vmem:[#allocation2] sm:$0xff]
    %v69 = vcombine.high %v36, %v36
    %v70 = vcombine.high %v37, %v37
    %v71 = vcombine.high %v38, %v38
    %v72 = vcombine.high %v39, %v39
    %v73 = vcombine.high %v40, %v40
    %v74 = vcombine.high %v41, %v41
    %v75 = vcombine.high %v42, %v42
    %v76 = vcombine.high %v43, %v43
    %v77 = vcombine.high %v44, %v44
    %v78 = vcombine.high %v45, %v45
    %v79 = vcombine.high %v46, %v46
    %v80 = vcombine.high %v47, %v47
    %v81 = vcombine.high %v48, %v48
    %v82 = vcombine.high %v49, %v49
    %v83 = vcombine.high %v50, %v50
    %v84 = vcombine.high %v51, %v51
    %vm101 = vcmask 1043456
    %v102 = vsel %vm101, %v36, 0.0
    %v103 = vsel %vm101, %v37, 0.0
    %v104 = vadd.f32 %v102, %v103
    %v105 = vsel %vm101, %v38, 0.0
    %v106 = vadd.f32 %v104, %v105
    %v107 = vsel %vm101, %v39, 0.0
    %v108 = vadd.f32 %v106, %v107
    %v109 = vsel %vm101, %v40, 0.0
    %v110 = vadd.f32 %v108, %v109
    %v111 = vsel %vm101, %v41, 0.0
    %v112 = vadd.f32 %v110, %v111
    %v113 = vsel %vm101, %v42, 0.0
    %v114 = vadd.f32 %v112, %v113
    %v115 = vsel %vm101, %v43, 0.0
    %v116 = vadd.f32 %v114, %v115
    %v117 = vsel %vm101, %v44, 0.0
    %v118 = vadd.f32 %v116, %v117
    %v119 = vsel %vm101, %v45, 0.0
    %v120 = vadd.f32 %v118, %v119
    %v121 = vsel %vm101, %v46, 0.0
    %v122 = vadd.f32 %v120, %v121
    %v123 = vsel %vm101, %v47, 0.0
    %v124 = vadd.f32 %v122, %v123
    %v125 = vsel %vm101, %v48, 0.0
    %v126 = vadd.f32 %v124, %v125
    %v127 = vsel %vm101, %v49, 0.0
    %v128 = vadd.f32 %v126, %v127
    %v129 = vsel %vm101, %v50, 0.0
    %v130 = vadd.f32 %v128, %v129
    %v131 = vsel %vm101, %v51, 0.0
    %v132 = vadd.f32 %v130, %v131
    %v133 = vsel %vm101, %v69, 0.0
    %v134 = vsel %vm101, %v70, 0.0
    %v135 = vadd.f32 %v133, %v134
    %v136 = vsel %vm101, %v71, 0.0
    %v137 = vadd.f32 %v135, %v136
    %v138 = vsel %vm101, %v72, 0.0
    %v139 = vadd.f32 %v137, %v138
    %v140 = vsel %vm101, %v73, 0.0
    %v141 = vadd.f32 %v139, %v140
    %v142 = vsel %vm101, %v74, 0.0
    %v143 = vadd.f32 %v141, %v142
    %v144 = vsel %vm101, %v75, 0.0
    %v145 = vadd.f32 %v143, %v144
    %v146 = vsel %vm101, %v76, 0.0
    %v147 = vadd.f32 %v145, %v146
    %v148 = vsel %vm101, %v77, 0.0
    %v149 = vadd.f32 %v147, %v148
    %v150 = vsel %vm101, %v78, 0.0
    %v151 = vadd.f32 %v149, %v150
    %v152 = vsel %vm101, %v79, 0.0
    %v153 = vadd.f32 %v151, %v152
    %v154 = vsel %vm101, %v80, 0.0
    %v155 = vadd.f32 %v153, %v154
    %v156 = vsel %vm101, %v81, 0.0
    %v157 = vadd.f32 %v155, %v156
    %v158 = vsel %vm101, %v82, 0.0
    %v159 = vadd.f32 %v157, %v158
    %v160 = vsel %vm101, %v83, 0.0
    %v161 = vadd.f32 %v159, %v160
    %v162 = vsel %vm101, %v84, 0.0
    %v163 = vadd.f32 %v161, %v162
    %v166 = vcombine.low %v132, %v163
    %v168 = vadd.f32 %v52, %v166
    %169 = vst [vmem:[#allocation2] sm:$0xff] %v168
    %v170 = vld [vmem:[#allocation3] sm:$0xff]
    %v171 = vmul.f32 %v36, %v36
    %v172 = vmul.f32 %v37, %v37
    %v173 = vmul.f32 %v38, %v38
    %v174 = vmul.f32 %v39, %v39
    %v175 = vmul.f32 %v40, %v40
    %v176 = vmul.f32 %v41, %v41
    %v177 = vmul.f32 %v42, %v42
    %v178 = vmul.f32 %v43, %v43
    %v179 = vmul.f32 %v44, %v44
    %v180 = vmul.f32 %v45, %v45
    %v181 = vmul.f32 %v46, %v46
    %v182 = vmul.f32 %v47, %v47
    %v183 = vmul.f32 %v48, %v48
    %v184 = vmul.f32 %v49, %v49
    %v185 = vmul.f32 %v50, %v50
    %v186 = vmul.f32 %v51, %v51
    %v203 = vcombine.high %v171, %v171
    %v204 = vcombine.high %v172, %v172
    %v205 = vcombine.high %v173, %v173
    %v206 = vcombine.high %v174, %v174
    %v207 = vcombine.high %v175, %v175
    %v208 = vcombine.high %v176, %v176
    %v209 = vcombine.high %v177, %v177
    %v210 = vcombine.high %v178, %v178
    %v211 = vcombine.high %v179, %v179
    %v212 = vcombine.high %v180, %v180
    %v213 = vcombine.high %v181, %v181
    %v214 = vcombine.high %v182, %v182
    %v215 = vcombine.high %v183, %v183
    %v216 = vcombine.high %v184, %v184
    %v217 = vcombine.high %v185, %v185
    %v218 = vcombine.high %v186, %v186
    %v235 = vsel %vm101, %v171, 0.0
    %v236 = vsel %vm101, %v172, 0.0
    %v237 = vadd.f32 %v235, %v236
    %v238 = vsel %vm101, %v173, 0.0
    %v239 = vadd.f32 %v237, %v238
    %v240 = vsel %vm101, %v174, 0.0
    %v241 = vadd.f32 %v239, %v240
    %v242 = vsel %vm101, %v175, 0.0
    %v243 = vadd.f32 %v241, %v242
    %v244 = vsel %vm101, %v176, 0.0
    %v245 = vadd.f32 %v243, %v244
    %v246 = vsel %vm101, %v177, 0.0
    %v247 = vadd.f32 %v245, %v246
    %v248 = vsel %vm101, %v178, 0.0
    %v249 = vadd.f32 %v247, %v248
    %v250 = vsel %vm101, %v179, 0.0
    %v251 = vadd.f32 %v249, %v250
    %v252 = vsel %vm101, %v180, 0.0
    %v253 = vadd.f32 %v251, %v252
    %v254 = vsel %vm101, %v181, 0.0
    %v255 = vadd.f32 %v253, %v254
    %v256 = vsel %vm101, %v182, 0.0
    %v257 = vadd.f32 %v255, %v256
    %v258 = vsel %vm101, %v183, 0.0
    %v259 = vadd.f32 %v257, %v258
    %v260 = vsel %vm101, %v184, 0.0
    %v261 = vadd.f32 %v259, %v260
    %v262 = vsel %vm101, %v185, 0.0
    %v263 = vadd.f32 %v261, %v262
    %v264 = vsel %vm101, %v186, 0.0
    %v265 = vadd.f32 %v263, %v264
    %v266 = vsel %vm101, %v203, 0.0
    %v267 = vsel %vm101, %v204, 0.0
    %v268 = vadd.f32 %v266, %v267
    %v269 = vsel %vm101, %v205, 0.0
    %v270 = vadd.f32 %v268, %v269
    %v271 = vsel %vm101, %v206, 0.0
    %v272 = vadd.f32 %v270, %v271
    %v273 = vsel %vm101, %v207, 0.0
    %v274 = vadd.f32 %v272, %v273
    %v275 = vsel %vm101, %v208, 0.0
    %v276 = vadd.f32 %v274, %v275
    %v277 = vsel %vm101, %v209, 0.0
    %v278 = vadd.f32 %v276, %v277
    %v279 = vsel %vm101, %v210, 0.0
    %v280 = vadd.f32 %v278, %v279
    %v281 = vsel %vm101, %v211, 0.0
    %v282 = vadd.f32 %v280, %v281
    %v283 = vsel %vm101, %v212, 0.0
    %v284 = vadd.f32 %v282, %v283
    %v285 = vsel %vm101, %v213, 0.0
    %v286 = vadd.f32 %v284, %v285
    %v287 = vsel %vm101, %v214, 0.0
    %v288 = vadd.f32 %v286, %v287
    %v289 = vsel %vm101, %v215, 0.0
    %v290 = vadd.f32 %v288, %v289
    %v291 = vsel %vm101, %v216, 0.0
    %v292 = vadd.f32 %v290, %v291
    %v293 = vsel %vm101, %v217, 0.0
    %v294 = vadd.f32 %v292, %v293
    %v295 = vsel %vm101, %v218, 0.0
    %v296 = vadd.f32 %v294, %v295
    %v299 = vcombine.low %v265, %v296
    %v301 = vadd.f32 %v170, %v299
    %302 = vst [vmem:[#allocation3] sm:$0xff] %v301
    // Predicated region
    $region22: #{tpu_custom_call.1} parent=1 // pred_check
      %p303 = pneg %p30
    $region23: #{tpu_custom_call.1} parent=1 // pred_check_branch
      %305 = sbr.rel (%p303) target = $region25
    $region24: #{tpu_custom_call.1} parent=1 // pred_region
      %v306 = vld [vmem:[#allocation2] sm:$0xff]
      %v308 = vcombine.high %v306, %v306
      %v310 = vsel %vm101, %v306, 0.0
      %v311 = vsel %vm101, %v308, 0.0
      %v312 = vadd.f32 %v310, %v311
      %313 = vadd.xlane.f32.xlu0 %v312
      %v314 = vpop.xlane.xlu0 %313
      %v315 = vld [vmem:[#allocation3] sm:$0xff]
      %v317 = vcombine.high %v315, %v315
      %v319 = vsel %vm101, %v315, 0.0
      %v320 = vsel %vm101, %v317, 0.0
      %v321 = vadd.f32 %v319, %v320
      %322 = vadd.xlane.f32.xlu0 %v321
      %v323 = vpop.xlane.xlu0 %322
      %v324 = vmul.f32 %v314, 0.00024414063
      %v325 = vmul.f32 %v323, 0.00024414063
      %v326 = vmul.f32 %v324, %v324
      %v327 = vsub.f32 %v325, %v326
      %v328 = vmax.f32 %v327, 0.0
      %v329 = vadd.f32 %v328, 1e-05
      %v330 = vrsqrt.pop %v329
      %v331 = vld [vmem:[%s1] sm:$0xf]
      %v332 = vmul.f32 %v331, %v330
      %vm333 = vcmask 3072
      %334 = vst.msk [vmem:[%s3] sm:$0xf] %vm333, %v332
      %v335 = vld [vmem:[%s2] sm:$0xf]
      %v336 = vmul.f32 %v324, %v332
      %v337 = vsub.f32 %v335, %v336
      %338 = vst.msk [vmem:[%s4] sm:$0xf] %vm333, %v337
    $region25: #{tpu_custom_call.1} parent=1 // pred_fallthru
      _
    // Predicated region
    $region26: #{tpu_custom_call.1} parent=1 // pred_check
      _
    $region27: #{tpu_custom_call.1} parent=1 // pred_check_branch
      %340 = sbr.rel (0) target = $region29
    $region28: #{tpu_custom_call.1} parent=1 // pred_region
      _
    $region29: #{tpu_custom_call.1} parent=1 // pred_fallthru
      _
    // Predicated region
    $region30: #{tpu_custom_call.1} parent=1 // pred_check
      _
    $region31: #{tpu_custom_call.1} parent=1 // pred_check_branch
      %342 = sbr.rel (0) target = $region33
    $region32: #{tpu_custom_call.1} parent=1 // pred_region
      _
    $region33: #{tpu_custom_call.1} parent=1 // pred_fallthru
      _
    // Predicated region
    $region34: #{tpu_custom_call.1} parent=1 // pred_check
      _
    $region35: #{tpu_custom_call.1} parent=1 // pred_check_branch
      %344 = sbr.rel (0) target = $region37
    $region36: #{tpu_custom_call.1} parent=1 // pred_region
      _
    $region37: #{tpu_custom_call.1} parent=1 // pred_fallthru
      _
    // Predicated region
    $region38: #{tpu_custom_call.1} parent=1 // pred_check
      _
    $region39: #{tpu_custom_call.1} parent=1 // pred_check_branch
      %346 = sbr.rel (0) target = $region41
    $region40: #{tpu_custom_call.1} parent=1 // pred_region
      _
    $region41: #{tpu_custom_call.1} parent=1 // pred_fallthru
      _
    %347 = vsyncpa [#allocation5], 1

</llo_original>
